<compile_context>
chip_gen: v7x
topology: tpu7x:2x2x1
jax: 0.10.0
libtpu: 0.0.40
codegen_flags: <defaults>
</compile_context>

<pallas_src>
import functools
import math

import jax
import jax.numpy as jnp
from jax.experimental import pallas as pl
from jax.experimental.pallas import tpu as pltpu


_MIB = 1024 * 1024


# --------------------------------------------------------------------------- #
# Chip-dependent budgets
# --------------------------------------------------------------------------- #
@functools.lru_cache(maxsize=None)
def _chip_info():
    """Returns (vmem_capacity_bytes, has_two_tensorcores) for the local TPU."""
    kind = ""
    try:
        kind = jax.devices()[0].device_kind.lower()
    except Exception:
        pass
    two_core = ("v7" in kind) or ("7x" in kind)          # v7x: 2 TensorCores
    vmem_cap = None
    try:
        vmem_cap = int(pltpu.get_tpu_info().vmem_capacity_bytes)
    except Exception:
        vmem_cap = None
    if vmem_cap is None:
        vmem_cap = (64 if two_core else 128) * _MIB       # v7x: 64 MiB, else 128
    two_core = two_core or vmem_cap <= 64 * _MIB
    return vmem_cap, two_core


def _budgets():
    """(fused_budget, tile_budget, vmem_limit_ceiling) in bytes."""
    vmem_cap, _ = _chip_info()
    return int(vmem_cap * 0.70), int(vmem_cap * 0.50), int(vmem_cap * 0.80)


def _vmem_limit(need_bytes):
    _, _, ceil = _budgets()
    return int(min(max(int(need_bytes), 16 * _MIB), ceil))


def _largest_divisor_leq(n, cap):
    cap = max(1, min(int(n), int(cap)))
    for d in range(cap, 0, -1):
        if n % d == 0:
            return d
    return 1


def _eca_k_size(channels: int, gamma: int = 2, b: int = 1) -> int:
    t = int(abs(math.log(channels, 2) + b) / gamma)
    return t if t % 2 else t + 1


# --------------------------------------------------------------------------- #
# Kernels
# --------------------------------------------------------------------------- #
def _conv_sigmoid_gate(pooled, w_ref):
    """pooled: (..., C, 1) f32 channel sums; w_ref: SMEM (K,) taps (mean folded in)."""
    C = pooled.shape[-2]
    K = w_ref.shape[0]
    pad = (K - 1) // 2
    pad_cfg = [(0, 0)] * (pooled.ndim - 2) + [(pad, pad), (0, 0)]
    y_pad = jnp.pad(pooled, pad_cfg)               # zero-padded channel axis
    acc = jnp.zeros_like(pooled)
    for tap in range(K):                           # K is tiny & static
        acc = acc + w_ref[tap] * y_pad[..., tap:tap + C, :]
    return jax.nn.sigmoid(acc)                     # (..., C, 1) f32


def _eca_fused_kernel(w_ref, x_ref, o_ref):
    # w_ref: SMEM (K,) f32; x_ref / o_ref: (Bb, C, S) in the input's native dtype.
    # Stream from the ref twice (vld is cheap); avoid slab-sized temporaries.
    pooled = jnp.sum(x_ref[...], axis=-1, keepdims=True, dtype=jnp.float32)  # (Bb,C,1)
    gate = _conv_sigmoid_gate(pooled, w_ref).astype(o_ref.dtype)             # (Bb,C,1)
    o_ref[...] = x_ref[...] * gate                                           # lane bcast


def _eca_pool_gate_kernel(w_ref, x_ref, g_ref, acc_ref, *, s_total, ts):
    # Grid: (B, n_spatial_tiles); spatial axis is a reduction ("arbitrary", last).
    # x_ref: (C, ts) squeezed block; g_ref: (C, 1); acc_ref: VMEM (C, 1) f32.
    t = pl.program_id(1)

    @pl.when(t == 0)
    def _():
        acc_ref[...] = jnp.zeros_like(acc_ref)

    # Ragged edge handled in-kernel: lanes at/past S are masked to zero before
    # the f32 accumulation (Pallas pads OOB block reads with undefined data).
    lane = jax.lax.broadcasted_iota(jnp.int32, x_ref.shape, dimension=1)
    valid = lane < (s_total - t * ts)
    masked = jnp.where(valid, x_ref[...], jnp.zeros((), x_ref.dtype))
    acc_ref[...] += jnp.sum(masked, axis=-1, keepdims=True, dtype=jnp.float32)

    @pl.when(t == pl.num_programs(1) - 1)
    def _():
        g_ref[...] = _conv_sigmoid_gate(acc_ref[...], w_ref).astype(g_ref.dtype)


def _eca_scale_kernel(x_ref, g_ref, o_ref):
    # (C, ts) * (C, 1): gate broadcasts over lanes in the native dtype.
    # Out-of-bounds columns of the edge block are dropped by Pallas on writeback.
    o_ref[...] = x_ref[...] * g_ref[...]


# --------------------------------------------------------------------------- #
# Wrappers
# --------------------------------------------------------------------------- #
def _pick_tile(C, S, itemsize, budget, buffered_slabs, max_tile=None):
    # Largest multiple of 128 such that `buffered_slabs` (C, ts) buffers fit.
    ts = (budget // (buffered_slabs * C * itemsize)) // 128 * 128
    ts = max(int(ts), 128)
    ts = min(ts, pl.cdiv(S, 128) * 128)
    if max_tile is not None:
        ts = min(ts, max(128, int(max_tile) // 128 * 128))
    return int(ts)


def _eca_fused(x3, w_taps, bb, single_buffer):
    B, C, S = x3.shape
    itemsize = jnp.dtype(x3.dtype).itemsize
    slab = C * S * itemsize
    K = int(w_taps.shape[0])
    buf_factor = 2 if single_buffer else 4
    limit = _vmem_limit(buf_factor * bb * slab + 2 * _MIB)

    if single_buffer:
        # Single grid step: double-buffering only doubles VMEM, so disable it.
        in_spec = pl.BlockSpec((bb, C, S), lambda i: (i, 0, 0),
                               pipeline_mode=pl.Buffered(1))
        out_spec = pl.BlockSpec((bb, C, S), lambda i: (i, 0, 0),
                                pipeline_mode=pl.Buffered(1))
    else:
        in_spec = pl.BlockSpec((bb, C, S), lambda i: (i, 0, 0))
        out_spec = pl.BlockSpec((bb, C, S), lambda i: (i, 0, 0))

    return pl.pallas_call(
        _eca_fused_kernel,
        out_shape=jax.ShapeDtypeStruct((B, C, S), x3.dtype),
        grid_spec=pltpu.PrefetchScalarGridSpec(
            num_scalar_prefetch=0,
            grid=(B // bb,),
            in_specs=[
                pl.BlockSpec(memory_space=pltpu.MemorySpace.SMEM),   # (K,) taps
                in_spec,
            ],
            out_specs=out_spec,
        ),
        compiler_params=pltpu.CompilerParams(
            dimension_semantics=("parallel",),
            vmem_limit_bytes=limit,
        ),
        cost_estimate=pl.CostEstimate(
            flops=int(2 * B * C * S + 2 * B * C * K),
            transcendentals=int(B * C),
            bytes_accessed=int(2 * B * slab),
        ),
    )(w_taps, x3)


def _eca_tiled(x3, w_taps, max_tile=None):
    B, C, S = x3.shape
    itemsize = jnp.dtype(x3.dtype).itemsize
    _, tile_budget, _ = _budgets()
    K = int(w_taps.shape[0])

    # Pass 1 only double-buffers its input (its (C, 1) output is tiny), so its
    # spatial tile can be ~2x the pass-2 tile (which buffers input + output).
    ts1 = _pick_tile(C, S, itemsize, tile_budget, 2, max_tile)
    ts2 = _pick_tile(C, S, itemsize, tile_budget, 4, max_tile)
    n1 = pl.cdiv(S, ts1)
    n2 = pl.cdiv(S, ts2)

    # Pass 1: per-channel pooled sums -> channel conv -> sigmoid gate, (B, C, 1).
    gate = pl.pallas_call(
        functools.partial(_eca_pool_gate_kernel, s_total=S, ts=ts1),
        out_shape=jax.ShapeDtypeStruct((B, C, 1), x3.dtype),
        grid_spec=pltpu.PrefetchScalarGridSpec(
            num_scalar_prefetch=0,
            grid=(B, n1),
            in_specs=[
                pl.BlockSpec(memory_space=pltpu.MemorySpace.SMEM),   # (K,) taps
                pl.BlockSpec((None, C, ts1), lambda b, t: (b, 0, t)),
            ],
            out_specs=pl.BlockSpec((None, C, 1), lambda b, t: (b, 0, 0)),
            scratch_shapes=[pltpu.VMEM((C, 1), jnp.float32)],
        ),
        compiler_params=pltpu.CompilerParams(
            dimension_semantics=("parallel", "arbitrary"),
            vmem_limit_bytes=_vmem_limit(2 * C * ts1 * itemsize + 4 * _MIB),
        ),
        cost_estimate=pl.CostEstimate(
            flops=int(B * C * S + 2 * B * C * K),
            transcendentals=int(B * C),
            bytes_accessed=int(B * C * S * itemsize + B * C * itemsize),
        ),
    )(w_taps, x3)

    # Pass 2: broadcast multiply, fully parallel over (batch, spatial tile).
    out3 = pl.pallas_call(
        _eca_scale_kernel,
        out_shape=jax.ShapeDtypeStruct((B, C, S), x3.dtype),
        grid_spec=pltpu.PrefetchScalarGridSpec(
            num_scalar_prefetch=0,
            grid=(B, n2),
            in_specs=[
                pl.BlockSpec((None, C, ts2), lambda b, t: (b, 0, t)),
                pl.BlockSpec((None, C, 1), lambda b, t: (b, 0, 0)),
            ],
            out_specs=pl.BlockSpec((None, C, ts2), lambda b, t: (b, 0, t)),
        ),
        compiler_params=pltpu.CompilerParams(
            dimension_semantics=("parallel", "parallel"),
            vmem_limit_bytes=_vmem_limit(4 * C * ts2 * itemsize + 4 * _MIB),
        ),
        cost_estimate=pl.CostEstimate(
            flops=int(B * C * S),
            transcendentals=0,
            bytes_accessed=int(2 * B * C * S * itemsize),
        ),
    )(x3, gate)
    return out3


def eca_selector(x, conv_weight, *, force_tiled=False, max_tile=None):
    """x: (B, C, H, W); conv_weight: PyTorch Conv1d weight, shape (1, 1, K)."""
    B, C, H, W = x.shape
    S = H * W
    K = conv_weight.shape[-1]

    # Fold the 1/(H*W) mean into the K conv taps (linear; exact up to FP order).
    w_taps = conv_weight.reshape(K).astype(jnp.float32) * (1.0 / float(S))

    # Flatten spatial dims so the lane (last) axis is H*W: lane-dense loads,
    # unmasked stores, clean lane-axis reduce.
    x3 = x.reshape(B, C, S)
    itemsize = jnp.dtype(x.dtype).itemsize
    slab = C * S * itemsize

    fused_budget, tile_budget, _ = _budgets()
    _, two_core = _chip_info()

    out3 = None
    if not force_tiled:
        bb_cap = fused_budget // (4 * slab)      # double-buffered in + out slabs
        use_fused = bb_cap >= 1
        single_buffer = False
        bb = 0
        if use_fused:
            # Batch several images per grid step to amortize per-step overhead.
            bb = _largest_divisor_leq(B, bb_cap)
        elif 2 * B * slab + 2 * _MIB <= fused_budget:
            # Whole batch fits single-buffered: one grid step, no double buffer.
            use_fused, single_buffer, bb = True, True, B

        if use_fused and two_core and B == 1:
            # v7x only (2 TensorCores): a single-batch fused call runs on one
            # core; the tiled pass-2 splits spatial tiles across both cores.
            # On single-core v5e/v6e the fused 2-pass path is strictly better.
            ts2_est = _pick_tile(C, S, itemsize, tile_budget, 4, max_tile)
            if pl.cdiv(S, ts2_est) >= 2:
                use_fused = False

        if use_fused:
            try:
                out3 = _eca_fused(x3, w_taps, bb, single_buffer)
            except Exception:
                if not single_buffer:
                    raise
                out3 = None          # Buffered(1) unsupported -> tiled fallback

    if out3 is None:
        out3 = _eca_tiled(x3, w_taps, max_tile=max_tile)
    return out3.reshape(B, C, H, W)


def eca_reference(x, conv_weight):
    """Pure-JAX reference matching the PyTorch forward."""
    B, C, H, W = x.shape
    K = conv_weight.shape[-1]
    pad = (K - 1) // 2
    w = conv_weight.reshape(K).astype(jnp.float32)
    y = jnp.mean(x.astype(jnp.float32), axis=(2, 3))      # (B, C)
    y_pad = jnp.pad(y, ((0, 0), (pad, pad)))              # (B, C + K - 1)
    conv = jnp.zeros((B, C), jnp.float32)
    for tap in range(K):
        conv = conv + w[tap] * y_pad[:, tap:tap + C]
    gate = jax.nn.sigmoid(conv)[:, :, None, None]
    return (x * gate.astype(x.dtype)).astype(x.dtype)


if __name__ == "__main__":
    B, C, H, W = 2, 16, 16, 16
    K = _eca_k_size(C)                                    # -> 3 for C=16

    key = jax.random.PRNGKey(0)
    kx, kw, kx2 = jax.random.split(key, 3)
    x = jax.random.normal(kx, (B, C, H, W), dtype=jnp.float32)

    # Deterministic init mimicking PyTorch Conv1d default (U[-1/sqrt(fan_in), ..]),
    # fan_in = in_channels * kernel_size = K.
    bound = 1.0 / math.sqrt(K)
    conv_weight = jax.random.uniform(
        kw, (1, 1, K), dtype=jnp.float32, minval=-bound, maxval=bound)

    ref = eca_reference(x, conv_weight)

    # Fused path (lane-dense (Bb, C, H*W) slab, all batches in one grid step).
    out = jax.block_until_ready(eca_selector(x, conv_weight))
    assert out.shape == x.shape
    assert jnp.allclose(out, ref, atol=1e-5, rtol=1e-5), "fused path mismatch"

    # Tiled two-pass path (forced small tile -> 2 spatial tiles per batch).
    out_t = jax.block_until_ready(
        eca_selector(x, conv_weight, force_tiled=True, max_tile=128))
    assert jnp.allclose(out_t, ref, atol=1e-5, rtol=1e-5), "tiled path mismatch"

    # Ragged spatial size (12*12 = 144, not a multiple of 128): edge tile is
    # masked in-kernel; no wrapper-side pad / slice.
    x2 = jax.random.normal(kx2, (B, C, 12, 12), dtype=jnp.float32)
    ref2 = eca_reference(x2, conv_weight)
    out2 = jax.block_until_ready(eca_selector(x2, conv_weight))
    assert jnp.allclose(out2, ref2, atol=1e-5, rtol=1e-5), "fused ragged mismatch"
    out2_t = jax.block_until_ready(
        eca_selector(x2, conv_weight, force_tiled=True, max_tile=128))
    assert jnp.allclose(out2_t, ref2, atol=1e-5, rtol=1e-5), "tiled ragged mismatch"

    print("KERNEL_OK")
</pallas_src>

<mosaic_0001>
module attributes {stable_mosaic.version = 11 : i64} {
  func.func @_eca_fused_kernel(%arg0: i32, %arg1: memref<3xf32, #tpu.memory_space<smem>>, %arg2: memref<2x16x256xf32, #tpu.memory_space<vmem>>, %arg3: memref<2x16x256xf32, #tpu.memory_space<vmem>>) attributes {dimension_semantics = [#tpu.dimension_semantics<parallel>], iteration_bounds = array<i64: 1>, scalar_prefetch = 0 : i64, scratch_operands = 0 : i64, tpu.core_type = #tpu.core_type<tc>, window_params = [{transform_indices = @transform_0, window_bounds = array<i64: 3>}, {transform_indices = @transform_1, window_bounds = array<i64: 2, 16, 256>}, {transform_indices = @transform_2, window_bounds = array<i64: 2, 16, 256>}]} {
    %c0 = arith.constant 0 : index
    %c0_0 = arith.constant 0 : index
    %c0_1 = arith.constant 0 : index
    %0 = vector.load %arg2[%c0, %c0_0, %c0_1] : memref<2x16x256xf32, #tpu.memory_space<vmem>>, vector<2x16x256xf32>
    %cst = arith.constant dense<0.000000e+00> : vector<2x16xf32>
    %1 = vector.multi_reduction <add>, %0, %cst [2] : vector<2x16x256xf32> to vector<2x16xf32>
    %2 = vector.shape_cast %1 : vector<2x16xf32> to vector<2x16x1xf32>
    %c0_i32 = arith.constant 0 : i32
    %3 = arith.sitofp %c0_i32 : i32 to f32
    %4 = vector.broadcast %3 : f32 to vector<2x1x1xf32>
    %5 = tpu.concatenate %4, %2 in 1 : vector<2x1x1xf32>, vector<2x16x1xf32> -> vector<2x17x1xf32>
    %6 = vector.broadcast %3 : f32 to vector<2x1x1xf32>
    %7 = tpu.concatenate %5, %6 in 1 : vector<2x17x1xf32>, vector<2x1x1xf32> -> vector<2x18x1xf32>
    %cst_2 = arith.constant 0.000000e+00 : f32
    %8 = vector.broadcast %cst_2 : f32 to vector<2x16x1xf32>
    %c0_3 = arith.constant 0 : index
    %9 = memref.load %arg1[%c0_3] : memref<3xf32, #tpu.memory_space<smem>>
    %10 = vector.extract_strided_slice %7 {offsets = [0, 0, 0], sizes = [2, 16, 1], strides = [1, 1, 1]} : vector<2x18x1xf32> to vector<2x16x1xf32>
    %11 = vector.broadcast %9 : f32 to vector<2x16x1xf32>
    %12 = arith.mulf %11, %10 : vector<2x16x1xf32>
    %13 = arith.addf %8, %12 : vector<2x16x1xf32>
    %c1 = arith.constant 1 : index
    %14 = memref.load %arg1[%c1] : memref<3xf32, #tpu.memory_space<smem>>
    %15 = vector.extract_strided_slice %7 {offsets = [0, 1, 0], sizes = [2, 16, 1], strides = [1, 1, 1]} : vector<2x18x1xf32> to vector<2x16x1xf32>
    %16 = vector.broadcast %14 : f32 to vector<2x16x1xf32>
    %17 = arith.mulf %16, %15 : vector<2x16x1xf32>
    %18 = arith.addf %13, %17 : vector<2x16x1xf32>
    %c2 = arith.constant 2 : index
    %19 = memref.load %arg1[%c2] : memref<3xf32, #tpu.memory_space<smem>>
    %20 = vector.extract_strided_slice %7 {offsets = [0, 2, 0], sizes = [2, 16, 1], strides = [1, 1, 1]} : vector<2x18x1xf32> to vector<2x16x1xf32>
    %21 = vector.broadcast %19 : f32 to vector<2x16x1xf32>
    %22 = arith.mulf %21, %20 : vector<2x16x1xf32>
    %23 = arith.addf %18, %22 : vector<2x16x1xf32>
    %24 = arith.negf %23 : vector<2x16x1xf32>
    %25 = math.exp %24 : vector<2x16x1xf32>
    %cst_4 = arith.constant 1.000000e+00 : f32
    %26 = vector.broadcast %cst_4 : f32 to vector<2x16x1xf32>
    %27 = arith.addf %26, %25 : vector<2x16x1xf32>
    %28 = arith.divf %26, %27 : vector<2x16x1xf32>
    %c0_5 = arith.constant 0 : index
    %c0_6 = arith.constant 0 : index
    %c0_7 = arith.constant 0 : index
    %29 = vector.load %arg2[%c0_5, %c0_6, %c0_7] : memref<2x16x256xf32, #tpu.memory_space<vmem>>, vector<2x16x256xf32>
    %30 = vector.broadcast %28 : vector<2x16x1xf32> to vector<2x16x256xf32>
    %31 = arith.mulf %29, %30 : vector<2x16x256xf32>
    %c0_8 = arith.constant 0 : index
    %c0_9 = arith.constant 0 : index
    %c0_10 = arith.constant 0 : index
    %32 = vector.load %arg3[%c0_8, %c0_9, %c0_10] : memref<2x16x256xf32, #tpu.memory_space<vmem>>, vector<2x16x256xf32>
    tpu.vector_store %arg3[%c0_8, %c0_9, %c0_10], %31 {strides = array<i32>} : memref<2x16x256xf32, #tpu.memory_space<vmem>>, vector<2x16x256xf32>,
    return
  }
  func.func @transform_0(%arg0: i32) -> i32 {
    %c0_i32 = arith.constant 0 : i32
    %c0_i32_0 = arith.constant 0 : i32
    return %c0_i32 : i32
  }
  func.func @transform_1(%arg0: i32) -> (i32, i32, i32) {
    %c0_i32 = arith.constant 0 : i32
    %c0_i32_0 = arith.constant 0 : i32
    %c0_i32_1 = arith.constant 0 : i32
    return %arg0, %c0_i32, %c0_i32_0 : i32, i32, i32
  }
  func.func @transform_2(%arg0: i32) -> (i32, i32, i32) {
    %c0_i32 = arith.constant 0 : i32
    %c0_i32_0 = arith.constant 0 : i32
    %c0_i32_1 = arith.constant 0 : i32
    return %arg0, %c0_i32, %c0_i32_0 : i32, i32, i32
  }
}

</mosaic_0001>

<llo_original>
// kernel: tpu_custom_call.1
$region0: #{tpu_custom_call.1}
  #allocation0 [shape = 'u32[]', space=smem, size = 0x4, offset = 0x4, fixed_abs, tag = 'smem constant byte address 0x4 - core index']
  #allocation1 [shape = 'u32[144,128]{1,0:T(1,128)}', space=vmem, size = 0x12000, scoped, tag = 'internal scratch']
  %s0 = inlined_call_operand.hbm [shape: f32[3], index: 0, kind: input, shape index: {}]
  %s1 = inlined_call_operand.hbm [shape: f32[2,16,256], index: 1, kind: input, shape index: {}]
  %s2 = inlined_call_operand.hbm [shape: f32[2,16,256], index: 2, kind: output, shape index: {}]
  %s3 = sld [smem:[#allocation0]]
  $region26: #{tpu_custom_call.1} parent=0
    _
  %s5 = ssub.s32 1, %s3
  %s6 = scalar_select 0, %s5, %s3
  $region1: #{tpu_custom_call.1} parent=0
    #allocation2 [shape = 'u8[512]{0}', space=smem, size = 0x200, scoped, tag = 'input window, operand 0, single buffered']
    #allocation3 [shape = 's32[1]{0}', space=sflag, size = 0x4, scoped, tag = 'scoped memory for tpu_custom_call.1']
    #allocation4 [shape = 's32[1]{0}', space=sflag, size = 0x4, scoped, tag = 'scoped memory for tpu_custom_call.1']
    #allocation5 [shape = 's32[1]{0}', space=sflag, size = 0x4, scoped, tag = 'scoped memory for tpu_custom_call.1']
    #allocation6 [shape = 'u8[32768]{0}', space=vmem, size = 0x8000, scoped, tag = 'input window, operand 1, single buffered']
    #allocation7 [shape = 'u8[32768]{0}', space=vmem, size = 0x8000, scoped, tag = 'output window, operand 0, single buffered']
    %7 = vsyncpa [#allocation5], 0
    %8 = vsyncpa [#allocation3], 0
    %9 = vsyncpa [#allocation4], 0
    // Predicated region
    $region2: #{tpu_custom_call.1} parent=1 // pred_check
      _
    $region3: #{tpu_custom_call.1} parent=1 // pred_check_branch
      %11 = sbr.rel (0) target = $region5
    $region4: #{tpu_custom_call.1} parent=1 // pred_region
      %s13 = ssub.s32 16, 16
      %14 = vsyncadd [#allocation5], %s13
      %17 = dma.hbm_to_smem %s0, 16, [#allocation2], [#allocation5]
    $region5: #{tpu_custom_call.1} parent=1 // pred_fallthru
      _
    // Predicated region
    $region6: #{tpu_custom_call.1} parent=1 // pred_check
      _
    $region7: #{tpu_custom_call.1} parent=1 // pred_check_branch
      %19 = sbr.rel (0) target = $region9
    $region8: #{tpu_custom_call.1} parent=1 // pred_region
      %s21 = ssub.s32 1024, 1024
      %22 = vsyncadd [#allocation3], %s21
      %s23 = sshll.u32 [#allocation6], 4
      %s24 = int_to_ptr.vmem [resolvable:$true] %s23
      %29 = dma.hbm_to_vmem [thread:$0]  %s1, 1024, %s24, [#allocation3], 256, 256, 16
    $region9: #{tpu_custom_call.1} parent=1 // pred_fallthru
      _
    // Predicated region
    $region10: #{tpu_custom_call.1} parent=1 // pred_check
      _
    $region11: #{tpu_custom_call.1} parent=1 // pred_check_branch
      %31 = sbr.rel (0) target = $region13
    $region12: #{tpu_custom_call.1} parent=1 // pred_region
      %32 = dma.done [#allocation5], 16
    $region13: #{tpu_custom_call.1} parent=1 // pred_fallthru
      _
    // Predicated region
    $region14: #{tpu_custom_call.1} parent=1 // pred_check
      _
    $region15: #{tpu_custom_call.1} parent=1 // pred_check_branch
      %34 = sbr.rel (0) target = $region17
    $region16: #{tpu_custom_call.1} parent=1 // pred_region
      %35 = dma.done [#allocation3], 1024
    $region17: #{tpu_custom_call.1} parent=1 // pred_fallthru
      _
    %36 = sfence
    %v37 = vld [vmem:[#allocation6] sm:$0xff]
    %v38 = vld [vmem:[#allocation6 + $0x8] sm:$0xff]
    %v39 = vld [vmem:[#allocation6 + $0x10] sm:$0xff]
    %v40 = vld [vmem:[#allocation6 + $0x18] sm:$0xff]
    %v41 = vld [vmem:[#allocation6 + $0x20] sm:$0xff]
    %v42 = vld [vmem:[#allocation6 + $0x28] sm:$0xff]
    %v43 = vld [vmem:[#allocation6 + $0x30] sm:$0xff]
    %v44 = vld [vmem:[#allocation6 + $0x38] sm:$0xff]
    %v45 = vadd.f32 %v37, %v38
    %46 = vadd.xlane.f32.xlu0 %v45
    %v47 = vpop.xlane.xlu0 %46
    %v48 = vadd.f32 %v39, %v40
    %49 = vadd.xlane.f32.xlu0 %v48
    %v50 = vpop.xlane.xlu0 %49
    %v51 = vadd.f32 %v41, %v42
    %52 = vadd.xlane.f32.xlu0 %v51
    %v53 = vpop.xlane.xlu0 %52
    %v54 = vadd.f32 %v43, %v44
    %55 = vadd.xlane.f32.xlu0 %v54
    %v56 = vpop.xlane.xlu0 %55
    %vm61 = vcmask 1040384
    %v62 = vrot.slane %v47, 7
    %v63 = vrot.slane %v50, 7
    %v64 = vsel %vm61, %v62, %v63
    %v65 = vrot.slane %v53, 7
    %v66 = vrot.slane %v56, 7
    %v67 = vsel %vm61, %v65, %v66
    %v74 = vsel %vm61, 0.0, %v62
    %v75 = vsel %vm61, 0.0, %v65
    %v76 = vsel %vm61, %v63, 0.0
    %v77 = vsel %vm61, %v66, 0.0
    %s78 = sld [smem:[#allocation2]]
    %v79 = vstv %s78
    %v80 = vmul.f32 %v79, %v74
    %v81 = vmul.f32 %v79, %v64
    %v82 = vmul.f32 %v79, %v75
    %v83 = vmul.f32 %v79, %v67
    %v84 = vadd.f32 %v80, 0.0
    %v85 = vadd.f32 %v81, 0.0
    %v86 = vadd.f32 %v82, 0.0
    %v87 = vadd.f32 %v83, 0.0
    %s88 = sld [smem:[#allocation2 + $0x1]]
    %v89 = vstv %s88
    %v90 = vmul.f32 %v89, %v74
    %v91 = vmul.f32 %v89, %v64
    %v92 = vmul.f32 %v89, %v76
    %v93 = vmul.f32 %v89, %v75
    %v94 = vmul.f32 %v89, %v67
    %v95 = vmul.f32 %v89, %v77
    %vm102 = vcmask 1046528
    %v103 = vrot.slane %v90, 1
    %v104 = vrot.slane %v91, 1
    %v105 = vsel %vm102, %v103, %v104
    %v106 = vrot.slane %v92, 1
    %v107 = vsel %vm102, %v104, %v106
    %v108 = vrot.slane %v93, 1
    %v109 = vrot.slane %v94, 1
    %v110 = vsel %vm102, %v108, %v109
    %v111 = vrot.slane %v95, 1
    %v112 = vsel %vm102, %v109, %v111
    %v117 = vadd.f32 %v84, %v105
    %v118 = vadd.f32 %v85, %v107
    %v119 = vadd.f32 %v86, %v110
    %v120 = vadd.f32 %v87, %v112
    %s121 = sld [smem:[#allocation2 + $0x2]]
    %v122 = vstv %s121
    %v123 = vmul.f32 %v122, %v74
    %v124 = vmul.f32 %v122, %v64
    %v125 = vmul.f32 %v122, %v76
    %v126 = vmul.f32 %v122, %v75
    %v127 = vmul.f32 %v122, %v67
    %v128 = vmul.f32 %v122, %v77
    %vm135 = vcmask 1045504
    %v136 = vrot.slane %v123, 2
    %v137 = vrot.slane %v124, 2
    %v138 = vsel %vm135, %v136, %v137
    %v139 = vrot.slane %v125, 2
    %v140 = vsel %vm135, %v137, %v139
    %v141 = vrot.slane %v126, 2
    %v142 = vrot.slane %v127, 2
    %v143 = vsel %vm135, %v141, %v142
    %v144 = vrot.slane %v128, 2
    %v145 = vsel %vm135, %v142, %v144
    %v150 = vadd.f32 %v117, %v138
    %v151 = vadd.f32 %v118, %v140
    %v152 = vadd.f32 %v119, %v143
    %v153 = vadd.f32 %v120, %v145
    %v154 = vxor.u32 %v150, 2147483648
    %v155 = vxor.u32 %v151, 2147483648
    %v156 = vxor.u32 %v152, 2147483648
    %v157 = vxor.u32 %v153, 2147483648
    %v158 = vmul.f32 %v154, 1.442695
    %v159 = vpow.pop %v158
    %v160 = vmul.f32 %v155, 1.442695
    %v161 = vpow.pop %v160
    %v162 = vmul.f32 %v156, 1.442695
    %v163 = vpow.pop %v162
    %v164 = vmul.f32 %v157, 1.442695
    %v165 = vpow.pop %v164
    %v166 = vadd.f32 %v159, 1.0
    %v167 = vadd.f32 %v161, 1.0
    %v168 = vadd.f32 %v163, 1.0
    %v169 = vadd.f32 %v165, 1.0
    %v170 = vrcp.pop %v166
    %v171 = vmul.f32 1.0, %v170
    %v172 = vrcp.pop %v167
    %v173 = vmul.f32 1.0, %v172
    %v174 = vrcp.pop %v168
    %v175 = vmul.f32 1.0, %v174
    %v176 = vrcp.pop %v169
    %v177 = vmul.f32 1.0, %v176
    %179 = vset.pattern.permute.xlu0 0
    %180 = vperm.xlu0 %179, %v171
    %v181 = vpop.permute.xlu0 %180
    %184 = vset.pattern.permute.xlu0 0
    %185 = vperm.xlu0 %184, %v173
    %v186 = vpop.permute.xlu0 %185
    %189 = vset.pattern.permute.xlu0 0
    %190 = vperm.xlu0 %189, %v175
    %v191 = vpop.permute.xlu0 %190
    %194 = vset.pattern.permute.xlu0 0
    %195 = vperm.xlu0 %194, %v177
    %v196 = vpop.permute.xlu0 %195
    %v198 = vmul.f32 %v37, %v181
    %v199 = vmul.f32 %v38, %v181
    %v200 = vmul.f32 %v39, %v186
    %v201 = vmul.f32 %v40, %v186
    %v202 = vmul.f32 %v41, %v191
    %v203 = vmul.f32 %v42, %v191
    %v204 = vmul.f32 %v43, %v196
    %v205 = vmul.f32 %v44, %v196
    %206 = vst [vmem:[#allocation7] sm:$0xff] %v198
    %207 = vst [vmem:[#allocation7 + $0x8] sm:$0xff] %v199
    %208 = vst [vmem:[#allocation7 + $0x10] sm:$0xff] %v200
    %209 = vst [vmem:[#allocation7 + $0x18] sm:$0xff] %v201
    %210 = vst [vmem:[#allocation7 + $0x20] sm:$0xff] %v202
    %211 = vst [vmem:[#allocation7 + $0x28] sm:$0xff] %v203
    %212 = vst [vmem:[#allocation7 + $0x30] sm:$0xff] %v204
    %213 = vst [vmem:[#allocation7 + $0x38] sm:$0xff] %v205
    // Predicated region
    $region18: #{tpu_custom_call.1} parent=1 // pred_check
      _
    $region19: #{tpu_custom_call.1} parent=1 // pred_check_branch
      %215 = sbr.rel (0) target = $region21
    $region20: #{tpu_custom_call.1} parent=1 // pred_region
      %s217 = ssub.s32 1024, 1024
      %218 = vsyncadd [#allocation4], %s217
      %s219 = sshll.u32 [#allocation7], 4
      %s220 = int_to_ptr.vmem [resolvable:$true] %s219
      %225 = dma.vmem_to_hbm [thread:$0]  %s220, 1024, %s2, [#allocation4], 256, 256, 16
    $region21: #{tpu_custom_call.1} parent=1 // pred_fallthru
      _
    // Predicated region
    $region22: #{tpu_custom_call.1} parent=1 // pred_check
      _
    $region23: #{tpu_custom_call.1} parent=1 // pred_check_branch
      %227 = sbr.rel (0) target = $region25
    $region24: #{tpu_custom_call.1} parent=1 // pred_region
      %228 = dma.done [#allocation4], 1024
    $region25: #{tpu_custom_call.1} parent=1 // pred_fallthru
      _
    %229 = vsyncpa [#allocation3], 1
    %230 = vsyncpa [#allocation4], 1
    %231 = vsyncpa [#allocation5], 1

</llo_original>
